<compile_context>
chip_gen: v6e
topology: v6e:2x2x1
jax: 0.10.0
libtpu: 0.0.40
codegen_flags: <defaults>
</compile_context>

<pallas_src>
import functools

import jax
import jax.numpy as jnp
from jax.experimental import pallas as pl
from jax.experimental.pallas import tpu as pltpu

K = 16  # number of output classes, as in the reference


def _round_up(v, m):
  return -(-v // m) * m


def _default_vmem_limit():
  cap = 128 * 1024 * 1024
  try:
    cap = int(pltpu.get_tpu_info().vmem_capacity_bytes)
  except Exception:
    pass
  # <= 60% of physical VMEM, capped at 64 MiB (v5e/v6e: 64 MiB, v7x: ~38 MiB).
  return min(64 * 1024 * 1024, int(cap * 0.6))


_VMEM_LIMIT = _default_vmem_limit()


# ----------------------------------------------------------------------------
# Input repacking helper (pure JAX glue: pad + stride-phase split + flatten).
# ----------------------------------------------------------------------------
def _phase_flatten(x, kh, kw, stride, dilation, padding, Ho, Wo, pad_value,
                   tm_target):
  """x: (N, H, W, C) -> (N, S*S, Hq*Wq, C) flattened stride-phases.

  Wq is rounded to a multiple of 8 (sublane-aligned row shifts) and Hq is
  chosen so that every tap window of length m_pad = tm * m_tiles stays in
  bounds of the flattened slab.
  """
  N, H, W_, C = x.shape
  S = stride
  ro_max = ((kh - 1) * dilation) // S
  co_max = ((kw - 1) * dilation) // S
  Wq = _round_up(max(Wo + co_max, -(-(W_ + 2 * padding) // S)), 8)
  mfull = Ho * Wq
  if mfull <= tm_target:
    tm = _round_up(mfull, 8)
    m_tiles = 1
  else:
    tm = tm_target
    m_tiles = -(-mfull // tm)
  m_pad = tm * m_tiles
  Hq = max(ro_max + -(-(co_max + m_pad) // Wq), -(-(H + 2 * padding) // S))
  Hpad, Wpad = Hq * S, Wq * S
  xp = jnp.pad(
      x,
      ((0, 0), (padding, Hpad - H - padding), (padding, Wpad - W_ - padding),
       (0, 0)),
      constant_values=pad_value)
  if S == 1:
    phases = xp[:, None]
  else:
    phases = jnp.stack(
        [xp[:, p::S, q::S, :] for p in range(S) for q in range(S)], axis=1)
  phases = phases.reshape(N, S * S, Hq * Wq, C)
  return phases, Hq, Wq, tm, m_tiles, m_pad


def _tm_for(cout_pad):
  # f32 partial (tm, cout_pad) should stay ~<= 256 KiB (vreg file size).
  return _round_up(max(64, min(512, (1 << 16) // cout_pad)), 8)


# ----------------------------------------------------------------------------
# Pallas kernels
# ----------------------------------------------------------------------------
def _conv_kernel(x_ref, w_ref, b_ref, *rest, kh, kw, stride, dilation, wq, tm,
                 relu, has_residual):
  """One grid step = one (image, M-tile).  Per kernel row: fold the kw column
  taps into the contraction (K = kw*Cin) and issue one MXU matmul; sum the
  kh row partials in registers; fused bias / residual / ReLU epilogue."""
  if has_residual:
    r_ref, o_ref = rest
  else:
    (o_ref,) = rest

  m_off = pl.multiple_of(pl.program_id(1) * tm, 8)

  acc = None
  for i in range(kh):                      # static loop over kernel rows
    row = i * dilation
    ro, pr = row // stride, row % stride
    parts = []
    for j in range(kw):                    # static loop over kernel columns
      col = j * dilation
      co, pc = col // stride, col % stride
      ph = pr * stride + pc
      start = ro * wq + co + m_off         # ro*wq and m_off are 8-aligned
      parts.append(x_ref[0, ph, pl.ds(start, tm), :])
    lhs = parts[0] if kw == 1 else jnp.concatenate(parts, axis=-1)
    contrib = jnp.dot(lhs, w_ref[i], preferred_element_type=jnp.float32)
    acc = contrib if acc is None else acc + contrib

  out = acc + b_ref[...]
  if has_residual:
    out = out + r_ref[0].astype(jnp.float32)
  if relu:
    out = jnp.maximum(out, 0.0)
  o_ref[...] = out.reshape(o_ref.shape).astype(o_ref.dtype)


def _maxpool_kernel(x_ref, o_ref, *, wq, tm):
  """MaxPool2d(3, stride=2, pad=1): 9 in-VMEM maxima over phase slabs."""
  m_off = pl.multiple_of(pl.program_id(1) * tm, 8)
  r = None
  for ti in range(3):
    for tj in range(3):
      ph = (ti % 2) * 2 + (tj % 2)
      start = (ti // 2) * wq + (tj // 2) + m_off
      v = x_ref[0, ph, pl.ds(start, tm), :]
      r = v if r is None else jnp.maximum(r, v)
  o_ref[...] = r.reshape(o_ref.shape).astype(o_ref.dtype)


def _stem_kernel(x_ref, w_ref, b_ref, o_ref):
  """conv1 stem: im2col'ed patches -> one deep matmul + bias + ReLU."""
  out = jnp.dot(x_ref[0], w_ref[...],
                preferred_element_type=jnp.float32) + b_ref[...]
  o_ref[...] = jnp.maximum(out, 0.0).reshape(o_ref.shape).astype(o_ref.dtype)


def _head_kernel(x_ref, w_ref, b_ref, o_ref):
  """Fused batch-max + ConvTranspose2d(K,K,16,stride=16) matmul (lane-dense)."""
  xm = jnp.max(x_ref[...], axis=0)                       # (tm, 128) bf16
  o_ref[...] = jnp.dot(xm, w_ref[...],
                       preferred_element_type=jnp.float32) + b_ref[...]


# ----------------------------------------------------------------------------
# Wrappers
# ----------------------------------------------------------------------------
def _fold_weight(w, scale, cin_pad, cout_pad):
  """(Cout, Cin, kh, kw) -> (kh, kw*cin_pad, cout_pad) bf16, BN scale folded."""
  Cout, Cin, kh, kw = w.shape
  wt = jnp.transpose(w.astype(jnp.float32), (2, 3, 1, 0))   # (kh, kw, Cin, Cout)
  if scale is not None:
    wt = wt * scale.astype(jnp.float32).reshape(1, 1, 1, Cout)
  wt = jnp.pad(wt, ((0, 0), (0, 0), (0, cin_pad - Cin), (0, cout_pad - Cout)))
  return wt.reshape(kh, kw * cin_pad, cout_pad).astype(jnp.bfloat16)


def conv2d_pallas(x, w, *, stride=1, padding=0, dilation=1, scale=None,
                  bias=None, residual=None, relu=False, cout_pad=None,
                  out_dtype=jnp.bfloat16):
  """Fused conv + folded-BN bias + optional residual + ReLU (one pallas_call).

  x: (N, H, W, Cact) with Cact a multiple of 128 (padded channels are zero).
  w: (Cout, Cin, kh, kw) (PyTorch layout, bias=False), Cin <= Cact.
  """
  N, H, W_, Cact = x.shape
  Cout, Cin, kh, kw = w.shape
  assert Cin <= Cact and Cact % 128 == 0
  Coutp = cout_pad if cout_pad is not None else _round_up(Cout, 128)
  Ho = (H + 2 * padding - dilation * (kh - 1) - 1) // stride + 1
  Wo = (W_ + 2 * padding - dilation * (kw - 1) - 1) // stride + 1

  wt = _fold_weight(w, scale, Cact, Coutp)                 # (kh, kw*Cact, Coutp)
  if bias is None:
    b2 = jnp.zeros((1, Coutp), jnp.float32)
  else:
    b2 = jnp.pad(bias.astype(jnp.float32).reshape(1, Cout),
                 ((0, 0), (0, Coutp - Cout)))

  phases, Hq, Wq, tm, m_tiles, m_pad = _phase_flatten(
      x.astype(jnp.bfloat16), kh, kw, stride, dilation, padding, Ho, Wo, 0.0,
      _tm_for(Coutp))
  P = stride * stride
  mfull = Ho * Wq

  has_res = residual is not None
  args = [phases, wt, b2]
  in_specs = [
      pl.BlockSpec((1, P, Hq * Wq, Cact), lambda n, m: (n, 0, 0, 0)),
      pl.BlockSpec((kh, kw * Cact, Coutp), lambda n, m: (0, 0, 0)),  # resident
      pl.BlockSpec((1, Coutp), lambda n, m: (0, 0)),
  ]
  if has_res:
    assert residual.shape == (N, Ho, Wo, Coutp), (residual.shape, (N, Ho, Wo,
                                                                   Coutp))
    res = jnp.pad(residual.astype(jnp.bfloat16),
                  ((0, 0), (0, 0), (0, Wq - Wo), (0, 0))).reshape(N, mfull,
                                                                  Coutp)
    res = jnp.pad(res, ((0, 0), (0, m_pad - mfull), (0, 0)))
    args.append(res)
    in_specs.append(pl.BlockSpec((1, tm, Coutp), lambda n, m: (n, m, 0)))

  kernel = functools.partial(_conv_kernel, kh=kh, kw=kw, stride=stride,
                             dilation=dilation, wq=Wq, tm=tm, relu=relu,
                             has_residual=has_res)

  out = pl.pallas_call(
      kernel,
      out_shape=jax.ShapeDtypeStruct((N, m_pad, Coutp), out_dtype),
      grid_spec=pltpu.PrefetchScalarGridSpec(
          num_scalar_prefetch=0,
          grid=(N, m_tiles),
          in_specs=in_specs,
          out_specs=pl.BlockSpec((1, tm, Coutp), lambda n, m: (n, m, 0))),
      compiler_params=pltpu.CompilerParams(
          dimension_semantics=("parallel", "parallel"),
          vmem_limit_bytes=_VMEM_LIMIT),
  )(*args)

  return out[:, :mfull].reshape(N, Ho, Wq, Coutp)[:, :, :Wo, :]


def conv1_stem_pallas(x, w, scale, bias, cout_pad=128):
  """7x7 stride-2 pad-3 stem via JAX im2col (runs once) + one deep matmul."""
  N, H, W_, Cin = x.shape
  Cout, _, kh, kw = w.shape
  s, p = 2, 3
  Ho = (H + 2 * p - (kh - 1) - 1) // s + 1
  Wo = (W_ + 2 * p - (kw - 1) - 1) // s + 1
  xp = jnp.pad(x.astype(jnp.bfloat16), ((0, 0), (p, p), (p, p), (0, 0)))
  cols = [xp[:, i:i + s * Ho:s, j:j + s * Wo:s, :]
          for i in range(kh) for j in range(kw)]
  patches = jnp.concatenate(cols, axis=-1).reshape(N, Ho * Wo, kh * kw * Cin)

  Kdim = kh * kw * Cin                              # 147
  Kp = _round_up(Kdim, 128)                         # 256: lane-dense, deep MXU
  M = Ho * Wo
  tm = _round_up(min(512, M), 8)
  m_tiles = -(-M // tm)
  m_pad = tm * m_tiles
  patches = jnp.pad(patches, ((0, 0), (0, m_pad - M), (0, Kp - Kdim)))

  wt = jnp.transpose(w.astype(jnp.float32), (2, 3, 1, 0))
  wt = wt * scale.astype(jnp.float32).reshape(1, 1, 1, Cout)
  wt = wt.reshape(Kdim, Cout)
  wt = jnp.pad(wt, ((0, Kp - Kdim), (0, cout_pad - Cout))).astype(jnp.bfloat16)
  b2 = jnp.pad(bias.astype(jnp.float32).reshape(1, Cout),
               ((0, 0), (0, cout_pad - Cout)))

  out = pl.pallas_call(
      _stem_kernel,
      out_shape=jax.ShapeDtypeStruct((N, m_pad, cout_pad), jnp.bfloat16),
      grid_spec=pltpu.PrefetchScalarGridSpec(
          num_scalar_prefetch=0,
          grid=(N, m_tiles),
          in_specs=[pl.BlockSpec((1, tm, Kp), lambda n, m: (n, m, 0)),
                    pl.BlockSpec((Kp, cout_pad), lambda n, m: (0, 0)),
                    pl.BlockSpec((1, cout_pad), lambda n, m: (0, 0))],
          out_specs=pl.BlockSpec((1, tm, cout_pad), lambda n, m: (n, m, 0))),
      compiler_params=pltpu.CompilerParams(
          dimension_semantics=("parallel", "parallel"),
          vmem_limit_bytes=_VMEM_LIMIT),
  )(patches, wt, b2)
  return out[:, :M].reshape(N, Ho, Wo, cout_pad)


def maxpool3x3_s2_pallas(x):
  """MaxPool2d(kernel=3, stride=2, padding=1) on NHWC (lane-dense C)."""
  N, H, W_, C = x.shape
  k, s, pad = 3, 2, 1
  Ho = (H + 2 * pad - (k - 1) - 1) // s + 1
  Wo = (W_ + 2 * pad - (k - 1) - 1) // s + 1
  phases, Hq, Wq, tm, m_tiles, m_pad = _phase_flatten(
      x.astype(jnp.bfloat16), k, k, s, 1, pad, Ho, Wo, -jnp.inf, _tm_for(C))
  mfull = Ho * Wq
  kernel = functools.partial(_maxpool_kernel, wq=Wq, tm=tm)
  out = pl.pallas_call(
      kernel,
      out_shape=jax.ShapeDtypeStruct((N, m_pad, C), jnp.bfloat16),
      grid_spec=pltpu.PrefetchScalarGridSpec(
          num_scalar_prefetch=0,
          grid=(N, m_tiles),
          in_specs=[pl.BlockSpec((1, 4, Hq * Wq, C), lambda n, m: (n, 0, 0, 0))],
          out_specs=pl.BlockSpec((1, tm, C), lambda n, m: (n, m, 0))),
      compiler_params=pltpu.CompilerParams(
          dimension_semantics=("parallel", "parallel"),
          vmem_limit_bytes=_VMEM_LIMIT),
  )(phases)
  return out[:, :mfull].reshape(N, Ho, Wq, C)[:, :, :Wo, :]


def head_pallas(x, tc_w, tc_b):
  """Fused x.max(0) + ConvTranspose2d(K, K, 16, stride=16), gridded over rows.

  x: (N, H, W, 128) with only the first K channels nonzero.
  tc_w: (K, K, 16, 16) PyTorch ConvTranspose2d layout; kernel==stride==16 and
  padding==0, so this is an exact per-pixel matmul with a 4096-wide output.
  """
  N, H, W_, Cp = x.shape
  Cin_w, Cout, kh, kw = tc_w.shape
  Ncols = Cout * kh * kw
  wmat = tc_w.astype(jnp.float32).reshape(Cin_w, Ncols)
  wmat = jnp.pad(wmat, ((0, Cp - Cin_w), (0, 0))).astype(jnp.bfloat16)
  bias_cols = jnp.repeat(tc_b.astype(jnp.float32), kh * kw).reshape(1, Ncols)

  M = H * W_
  tm = _round_up(min(512, M), 8)
  m_tiles = -(-M // tm)
  m_pad = tm * m_tiles
  xf = jnp.pad(x.reshape(N, M, Cp).astype(jnp.bfloat16),
               ((0, 0), (0, m_pad - M), (0, 0)))

  out = pl.pallas_call(
      _head_kernel,
      out_shape=jax.ShapeDtypeStruct((m_pad, Ncols), jnp.float32),
      grid_spec=pltpu.PrefetchScalarGridSpec(
          num_scalar_prefetch=0,
          grid=(m_tiles,),
          in_specs=[pl.BlockSpec((N, tm, Cp), lambda m: (0, m, 0)),
                    pl.BlockSpec((Cp, Ncols), lambda m: (0, 0)),
                    pl.BlockSpec((1, Ncols), lambda m: (0, 0))],
          out_specs=pl.BlockSpec((tm, Ncols), lambda m: (m, 0))),
      compiler_params=pltpu.CompilerParams(
          dimension_semantics=("parallel",),
          vmem_limit_bytes=_VMEM_LIMIT),
  )(xf, wmat, bias_cols)

  out = out[:M].reshape(H, W_, Cout, kh, kw)
  out = jnp.transpose(out, (2, 0, 3, 1, 4)).reshape(Cout, H * kh, W_ * kw)
  return out


# ----------------------------------------------------------------------------
# Parameter init (deterministic, synthetic; BN folded to scale/bias, eval mode)
# ----------------------------------------------------------------------------
def _make_bn(key, c, eps=1e-5):
  k1, k2, k3, k4 = jax.random.split(key, 4)
  gamma = 1.0 + 0.1 * jax.random.normal(k1, (c,))
  beta = 0.1 * jax.random.normal(k2, (c,))
  mean = 0.1 * jax.random.normal(k3, (c,))
  var = 1.0 + 0.1 * jax.random.uniform(k4, (c,))
  scale = gamma / jnp.sqrt(var + eps)
  bias = beta - mean * scale
  return scale.astype(jnp.float32), bias.astype(jnp.float32)


def init_params(key, layers=(1, 1, 1, 1)):
  keys = iter(jax.random.split(key, 256))
  nk = lambda: next(keys)
  conv_w = lambda shape: (0.05 * jax.random.normal(nk(), shape)).astype(
      jnp.float32)

  params = {}
  params['conv1_w'] = conv_w((64, 3, 7, 7))
  params['bn1_scale'], params['bn1_bias'] = _make_bn(nk(), 64)

  in_ch = 64
  layer_specs = [(64, layers[0], 1, 1, 1),
                 (128, layers[1], 2, 1, 1),
                 (256, layers[2], 2, 1, 1),
                 (512, layers[3], 1, 2, 2)]
  params['layers'] = []
  for out_ch, nblocks, stride, padding, dilation in layer_specs:
    blocks = []
    for bidx in range(nblocks):
      s, p, d = (stride, padding, dilation) if bidx == 0 else (1, 1, 1)
      bp = {'cfg': (s, p, d)}
      bp['conv1_w'] = conv_w((out_ch, in_ch, 3, 3))
      bp['bn1_scale'], bp['bn1_bias'] = _make_bn(nk(), out_ch)
      bp['conv2_w'] = conv_w((out_ch, out_ch, 3, 3))
      bp['bn2_scale'], bp['bn2_bias'] = _make_bn(nk(), out_ch)
      if bidx == 0 and (s != 1 or in_ch != out_ch):
        bp['ds_w'] = conv_w((out_ch, in_ch, 1, 1))
        bp['bn_ds_scale'], bp['bn_ds_bias'] = _make_bn(nk(), out_ch)
      blocks.append(bp)
      in_ch = out_ch
    params['layers'].append(blocks)

  params['last_w'] = conv_w((K, 512, 3, 3))
  params['tc_w'] = conv_w((K, K, 16, 16))   # (in, out, kh, kw) PyTorch layout
  params['tc_b'] = (0.05 * jax.random.normal(nk(), (K,))).astype(jnp.float32)
  return params


# ----------------------------------------------------------------------------
# Forward pass
# ----------------------------------------------------------------------------
def _basic_block(x, bp):
  s, p, d = bp['cfg']
  identity = x
  out = conv2d_pallas(x, bp['conv1_w'], stride=s, padding=p, dilation=d,
                      scale=bp['bn1_scale'], bias=bp['bn1_bias'], relu=True)
  if 'ds_w' in bp:
    identity = conv2d_pallas(x, bp['ds_w'], stride=s, padding=0, dilation=1,
                             scale=bp['bn_ds_scale'], bias=bp['bn_ds_bias'],
                             relu=False)
  out = conv2d_pallas(out, bp['conv2_w'], stride=1, padding=p, dilation=d,
                      scale=bp['bn2_scale'], bias=bp['bn2_bias'],
                      residual=identity, relu=True)
  return out


def resnet_forward(x_nchw, params):
  # PyTorch input is NCHW; convert once to NHWC and run the trunk in bf16 with
  # 128-lane-dense channel padding throughout.
  x = jnp.transpose(x_nchw, (0, 2, 3, 1)).astype(jnp.bfloat16)

  # conv1 + bn1 + relu (im2col stem, 256-deep contraction, 128-wide output)
  x = conv1_stem_pallas(x, params['conv1_w'], params['bn1_scale'],
                        params['bn1_bias'], cout_pad=128)
  # maxpool 3x3 / 2 / pad 1
  x = maxpool3x3_s2_pallas(x)

  # layer1..layer4
  for blocks in params['layers']:
    for bp in blocks:
      x = _basic_block(x, bp)

  # last_conv (3x3, pad 1, no bias, no BN, no relu), output padded to 128 lanes
  x = conv2d_pallas(x, params['last_w'], stride=1, padding=1, cout_pad=128)

  # x.max(0)[0] -> unsqueeze(0) -> transpose_conv -> squeeze(0)  (fused)
  out = head_pallas(x, params['tc_w'], params['tc_b'])
  return out  # (K, 16*H, 16*W) == PyTorch (C, H, W) after squeeze


# ----------------------------------------------------------------------------
if __name__ == "__main__":
  key = jax.random.PRNGKey(0)
  k_params, k_x = jax.random.split(key)

  params = init_params(k_params, layers=(1, 1, 1, 1))

  # Small input, NCHW like PyTorch: batch=2, channels=3, 32x32 spatial.
  x = jax.random.normal(k_x, (2, 3, 32, 32), dtype=jnp.float32)

  out = resnet_forward(x, params)
  out = jax.block_until_ready(out)

  assert out.shape == (K, 32, 32), out.shape
  assert bool(jnp.all(jnp.isfinite(out)))
  print("KERNEL_OK")
</pallas_src>

<mosaic_0001>
module attributes {stable_mosaic.version = 11 : i64} {
  func.func @_stem_kernel(%arg0: i32, %arg1: i32, %arg2: memref<1x256x256xbf16, #tpu.memory_space<vmem>>, %arg3: memref<256x128xbf16, #tpu.memory_space<vmem>>, %arg4: memref<1x128xf32, #tpu.memory_space<vmem>>, %arg5: memref<1x256x128xbf16, #tpu.memory_space<vmem>>) attributes {dimension_semantics = [#tpu.dimension_semantics<parallel>, #tpu.dimension_semantics<parallel>], iteration_bounds = array<i64: 2, 1>, scalar_prefetch = 0 : i64, scratch_operands = 0 : i64, tpu.core_type = #tpu.core_type<tc>, window_params = [{transform_indices = @transform_0, window_bounds = array<i64: 1, 256, 256>}, {pipeline_mode = #tpu.pipeline_mode<synchronous>, transform_indices = @transform_1, window_bounds = array<i64: 256, 128>}, {pipeline_mode = #tpu.pipeline_mode<synchronous>, transform_indices = @transform_2, window_bounds = array<i64: 1, 128>}, {transform_indices = @transform_3, window_bounds = array<i64: 1, 256, 128>}]} {
    %c0 = arith.constant 0 : index
    %c0_0 = arith.constant 0 : index
    %c0_1 = arith.constant 0 : index
    %0 = vector.load %arg2[%c0, %c0_0, %c0_1] : memref<1x256x256xbf16, #tpu.memory_space<vmem>>, vector<1x256x256xbf16>
    %1 = vector.shape_cast %0 : vector<1x256x256xbf16> to vector<256x256xbf16>
    %c0_2 = arith.constant 0 : index
    %c0_3 = arith.constant 0 : index
    %2 = vector.load %arg3[%c0_2, %c0_3] : memref<256x128xbf16, #tpu.memory_space<vmem>>, vector<256x128xbf16>
    %cst = arith.constant dense<0.000000e+00> : vector<256x128xf32>
    %3 = tpu.matmul %1, %2, %cst {dimension_numbers = #tpu.dot_dimension_numbers<[1], [0], [0], [1], [0, 0, 1, 1], [], []>} : vector<256x256xbf16>, vector<256x128xbf16>, vector<256x128xf32> -> vector<256x128xf32>
    %c0_4 = arith.constant 0 : index
    %c0_5 = arith.constant 0 : index
    %4 = vector.load %arg4[%c0_4, %c0_5] : memref<1x128xf32, #tpu.memory_space<vmem>>, vector<1x128xf32>
    %5 = vector.broadcast %4 : vector<1x128xf32> to vector<256x128xf32>
    %6 = arith.addf %3, %5 : vector<256x128xf32>
    %cst_6 = arith.constant 0.000000e+00 : f32
    %7 = vector.broadcast %cst_6 : f32 to vector<256x128xf32>
    %8 = arith.maximumf %6, %7 : vector<256x128xf32>
    %9 = vector.shape_cast %8 : vector<256x128xf32> to vector<1x256x128xf32>
    %10 = arith.truncf %9 : vector<1x256x128xf32> to vector<1x256x128xbf16>
    %c0_7 = arith.constant 0 : index
    %c0_8 = arith.constant 0 : index
    %c0_9 = arith.constant 0 : index
    %11 = vector.load %arg5[%c0_7, %c0_8, %c0_9] : memref<1x256x128xbf16, #tpu.memory_space<vmem>>, vector<1x256x128xbf16>
    tpu.vector_store %arg5[%c0_7, %c0_8, %c0_9], %10 {strides = array<i32>} : memref<1x256x128xbf16, #tpu.memory_space<vmem>>, vector<1x256x128xbf16>,
    return
  }
  func.func @transform_0(%arg0: i32, %arg1: i32) -> (i32, i32, i32) {
    %c0_i32 = arith.constant 0 : i32
    %c0_i32_0 = arith.constant 0 : i32
    return %arg0, %arg1, %c0_i32 : i32, i32, i32
  }
  func.func @transform_1(%arg0: i32, %arg1: i32) -> (i32, i32) {
    %c0_i32 = arith.constant 0 : i32
    %c0_i32_0 = arith.constant 0 : i32
    %c0_i32_1 = arith.constant 0 : i32
    return %c0_i32, %c0_i32_0 : i32, i32
  }
  func.func @transform_2(%arg0: i32, %arg1: i32) -> (i32, i32) {
    %c0_i32 = arith.constant 0 : i32
    %c0_i32_0 = arith.constant 0 : i32
    %c0_i32_1 = arith.constant 0 : i32
    return %c0_i32, %c0_i32_0 : i32, i32
  }
  func.func @transform_3(%arg0: i32, %arg1: i32) -> (i32, i32, i32) {
    %c0_i32 = arith.constant 0 : i32
    %c0_i32_0 = arith.constant 0 : i32
    return %arg0, %arg1, %c0_i32 : i32, i32, i32
  }
}

</mosaic_0001>

<llo_original>
// kernel: tpu_custom_call.1
$region0: #{tpu_custom_call.1}
  #allocation0 [shape = 'u32[]', space=smem, size = 0x4, offset = 0x4, fixed_abs, tag = 'smem constant byte address 0x4 - core index']
  #allocation1 [shape = 'u32[144,128]{1,0:T(1,128)}', space=vmem, size = 0x12000, scoped, tag = 'internal scratch']
  %s0 = inlined_call_operand.hbm [shape: bf16[2,256,256], index: 0, kind: input, shape index: {}]
  %s1 = inlined_call_operand.hbm [shape: bf16[256,128], index: 1, kind: input, shape index: {}]
  %s2 = inlined_call_operand.vmem [shape: f32[1,128], index: 2, kind: input, shape index: {}]
  %s3 = inlined_call_operand.hbm [shape: bf16[2,256,128], index: 3, kind: output, shape index: {}]
  %s4 = sld [smem:[#allocation0]]
  $region53: #{tpu_custom_call.1} parent=0
    _
  %s6 = ssub.s32 1, %s4
  %s7 = scalar_select 0, %s6, %s4
  $region1: #{tpu_custom_call.1} parent=0
    #allocation2 [shape = 'u8[262144]{0}', space=vmem, size = 0x40000, scoped, tag = 'input window, operand 0']
    #allocation3 [shape = 's32[2]{0}', space=sflag, size = 0x8, scoped, tag = 'scoped memory for tpu_custom_call.1']
    #allocation4 [shape = 's32[2]{0}', space=sflag, size = 0x8, scoped, tag = 'scoped memory for tpu_custom_call.1']
    #allocation5 [shape = 'u8[65536]{0}', space=vmem, size = 0x10000, scoped, tag = 'input window, operand 1, single buffered']
    #allocation6 [shape = 's32[1]{0}', space=sflag, size = 0x4, scoped, tag = 'scoped memory for tpu_custom_call.1']
    #allocation7 [shape = 'u8[131072]{0}', space=vmem, size = 0x20000, scoped, tag = 'output window, operand 0']
    %8 = vsyncpa [#allocation3], 0
    %s9 = scalar_lea.sflag [#allocation3], 1
    %10 = vsyncpa %s9, 0
    %11 = vsyncpa [#allocation6], 0
    %12 = vsyncpa [#allocation4], 0
    %s13 = scalar_lea.sflag [#allocation4], 1
    %14 = vsyncpa %s13, 0
    loop: start=0, step=1, limit=4
    $region2: #{tpu_custom_call.1} parent=1 // loop_pre_header
      _
    $region3: #{tpu_custom_call.1} parent=1 // loop_header
      %s16 = sphi 0, %s20
      %p17 = scmp.ge.s32.totalorder %s16, 4
      %s23 = sphi 0, %s35
      %s24 = sphi 0, %s31
      %s25 = sphi 0, %s23
      %s26 = sphi 0, %s24
      %s27 = sphi 0, %s25
      %s28 = sphi 0, %s26
      %s40 = sphi 0, %s42
      %s43 = sphi 0, %s40
      %s44 = sphi 0, %s43
      %s60 = sphi 0, %s44
      %s64 = sphi 0, %s64
      %s66 = sphi 0, %s64
      %s67 = sphi 0, %s66
      %s81 = sphi 0, %s67
      %s85 = sphi 0, %s85
      %s87 = sphi 0, %s85
      %s88 = sphi 0, %s87
      %s102 = sphi 0, %s88
      %s110 = sphi 0, %s112
      %s113 = sphi 0, %s110
      %s114 = sphi 0, %s113
      %s130 = sphi 0, %s114
    $region4: #{tpu_custom_call.1} parent=1 // loop_header_branch
      %19 = sbr.rel (%p17) target = $region8
    $region5: #{tpu_custom_call.1} parent=1 // loop_body
      %s21 = ssub.s32 %s16, 1
      %s22 = ssub.s32 %s16, 2
      %s29 = sadd.s32 1, %s24
      %p30 = scmp.ge.s32.totalorder %s29, 1
      %s31 = scalar_select %p30, 0, %s29
      %s32 = sadd.s32 1, %s23
      %s33 = scalar_select %p30, %s32, %s23
      %p34 = scmp.ge.s32.totalorder %s33, 2
      %s35 = scalar_select %p34, 0, %s33
      %s36 = ssub.s32 %s23, %s35
      %s37 = ssub.s32 %s24, %s31
      %s38 = sor.u32 %s36, %s37
      %p39 = scmp.eq.s32.totalorder %s38, 0
      %s41 = sadd.s32 %s40, 1
      %s42 = scalar_select %p39, %s40, %s41
      %p45 = pneg %p39
      %p46 = scmp.eq.s32.totalorder %s16, 1
      %p47 = por %p45, %p46
      %p48 = scmp.ne.s32.totalorder %s40, %s43
      %p49 = scmp.eq.s32.totalorder %s16, 0
      %p50 = por %p48, %p49
      %p51 = scmp.ne.s32.totalorder %s40, %s43
      %p52 = scmp.eq.s32.totalorder %s21, 1
      %p53 = por %p51, %p52
      %p54 = scmp.ne.s32.totalorder %s43, %s44
      %p55 = scmp.eq.s32.totalorder %s21, 0
      %p56 = por %p54, %p55
      %p57 = scmp.ne.s32.totalorder %s43, %s44
      %p58 = scmp.eq.s32.totalorder %s22, 1
      %p59 = por %p57, %p58
      %p61 = scmp.ne.s32.totalorder %s44, %s60
      %p62 = scmp.eq.s32.totalorder %s22, 0
      %p63 = por %p61, %p62
      %s65 = sadd.s32 %s64, 1
      %p68 = scmp.eq.s32.totalorder %s16, 1
      %p69 = scmp.ne.s32.totalorder %s64, %s66
      %p70 = scmp.eq.s32.totalorder %s16, 0
      %p71 = por %p69, %p70
      %p72 = scmp.ne.s32.totalorder %s64, %s66
      %p73 = scmp.eq.s32.totalorder %s21, 1
      %p74 = por %p72, %p73
      %p75 = scmp.ne.s32.totalorder %s66, %s67
      %p76 = scmp.eq.s32.totalorder %s21, 0
      %p77 = por %p75, %p76
      %p78 = scmp.ne.s32.totalorder %s66, %s67
      %p79 = scmp.eq.s32.totalorder %s22, 1
      %p80 = por %p78, %p79
      %p82 = scmp.ne.s32.totalorder %s67, %s81
      %p83 = scmp.eq.s32.totalorder %s22, 0
      %p84 = por %p82, %p83
      %s86 = sadd.s32 %s85, 1
      %p89 = scmp.eq.s32.totalorder %s16, 1
      %p90 = scmp.ne.s32.totalorder %s85, %s87
      %p91 = scmp.eq.s32.totalorder %s16, 0
      %p92 = por %p90, %p91
      %p93 = scmp.ne.s32.totalorder %s85, %s87
      %p94 = scmp.eq.s32.totalorder %s21, 1
      %p95 = por %p93, %p94
      %p96 = scmp.ne.s32.totalorder %s87, %s88
      %p97 = scmp.eq.s32.totalorder %s21, 0
      %p98 = por %p96, %p97
      %p99 = scmp.ne.s32.totalorder %s87, %s88
      %p100 = scmp.eq.s32.totalorder %s22, 1
      %p101 = por %p99, %p100
      %p103 = scmp.ne.s32.totalorder %s88, %s102
      %p104 = scmp.eq.s32.totalorder %s22, 0
      %p105 = por %p103, %p104
      %s106 = ssub.s32 %s23, %s35
      %s107 = ssub.s32 %s24, %s31
      %s108 = sor.u32 %s106, %s107
      %p109 = scmp.eq.s32.totalorder %s108, 0
      %s111 = sadd.s32 %s110, 1
      %s112 = scalar_select %p109, %s110, %s111
      %p115 = pneg %p109
      %p116 = scmp.eq.s32.totalorder %s16, 1
      %p117 = por %p115, %p116
      %p118 = scmp.ne.s32.totalorder %s110, %s113
      %p119 = scmp.eq.s32.totalorder %s16, 0
      %p120 = por %p118, %p119
      %p121 = scmp.ne.s32.totalorder %s110, %s113
      %p122 = scmp.eq.s32.totalorder %s21, 1
      %p123 = por %p121, %p122
      %p124 = scmp.ne.s32.totalorder %s113, %s114
      %p125 = scmp.eq.s32.totalorder %s21, 0
      %p126 = por %p124, %p125
      %p127 = scmp.ne.s32.totalorder %s113, %s114
      %p128 = scmp.eq.s32.totalorder %s22, 1
      %p129 = por %p127, %p128
      %p131 = scmp.ne.s32.totalorder %s114, %s130
      %p132 = scmp.eq.s32.totalorder %s22, 0
      %p133 = por %p131, %p132
      %p134 = scmp.le.s32.totalorder 1, %s16
      %p135 = scmp.lt.s32.totalorder %s16, 3
      %p136 = pnand %p134, %p135
      %p137 = pneg %p136
      // Predicated region
      $region9: #{tpu_custom_call.1} parent=5 // pred_check
        _
      $region10: #{tpu_custom_call.1} parent=5 // pred_check_branch
        %139 = sbr.rel (%p136) target = $region12
      $region11: #{tpu_custom_call.1} parent=5 // pred_region
        %s140 = ssub.s32 %s16, 1
        // Predicated region
        $region13: #{tpu_custom_call.1} parent=11 // pred_check
          %p141 = pneg %p77
        $region14: #{tpu_custom_call.1} parent=11 // pred_check_branch
          %143 = sbr.rel (%p141) target = $region16
        $region15: #{tpu_custom_call.1} parent=11 // pred_region
          %s145 = ssub.s32 2048, 2048
          %146 = vsyncadd [#allocation6], %s145
          %s147 = sshll.u32 [#allocation5], 4
          %s148 = int_to_ptr.vmem [resolvable:$true] %s147
          %153 = dma.hbm_to_vmem [thread:$0]  %s1, 2048, %s148, [#allocation6], 64, 64, 4
        $region16: #{tpu_custom_call.1} parent=11 // pred_fallthru
          _
        // Predicated region
        $region17: #{tpu_custom_call.1} parent=11 // pred_check
          %p154 = pneg %p98
        $region18: #{tpu_custom_call.1} parent=11 // pred_check_branch
          %156 = sbr.rel (%p154) target = $region20
        $region19: #{tpu_custom_call.1} parent=11 // pred_region
          _
        $region20: #{tpu_custom_call.1} parent=11 // pred_fallthru
          _
      $region12: #{tpu_custom_call.1} parent=5 // pred_fallthru
        _
      %p157 = scmp.lt.s32.totalorder %s16, 2
      // Predicated region
      $region21: #{tpu_custom_call.1} parent=5 // pred_check
        %p158 = pneg %p157
      $region22: #{tpu_custom_call.1} parent=5 // pred_check_branch
        %160 = sbr.rel (%p158) target = $region24
      $region23: #{tpu_custom_call.1} parent=5 // pred_region
        // Predicated region
        $region25: #{tpu_custom_call.1} parent=23 // pred_check
          %p161 = pneg %p50
        $region26: #{tpu_custom_call.1} parent=23 // pred_check_branch
          %163 = sbr.rel (%p161) target = $region28
        $region27: #{tpu_custom_call.1} parent=23 // pred_region
          %s164 = sand.u32 %s40, 1
          %s165 = scalar_lea.sflag [#allocation3], %s164
          %s166 = sand.u32 %s40, 1
          %s167 = smul.addr %s166, 256
          %s168 = scalar_lea.vmem [#allocation2], %s167
          %s169 = smul.u32 32, %s24
          %s171 = ssub.s32 4096, 4096
          %172 = vsyncadd %s165, %s171
          %s173 = smul.addr %s169, 2
          %s174 = smul.addr %s23, 64
          %s175 = sadd.s32 %s173, %s174
          %s176 = smul.addr %s175, 64
          %s177 = scalar_lea.hbm %s0, %s176
          %s178 = sshll.u32 %s168, 4
          %s179 = int_to_ptr.vmem [resolvable:$true] %s178
          %184 = dma.hbm_to_vmem [thread:$0]  %s177, 4096, %s179, %s165, 128, 128, 8
        $region28: #{tpu_custom_call.1} parent=23 // pred_fallthru
          _
      $region24: #{tpu_custom_call.1} parent=5 // pred_fallthru
        _
      %p185 = scmp.le.s32.totalorder 1, %s16
      %p186 = scmp.lt.s32.totalorder %s16, 3
      %p187 = pnand %p185, %p186
      %p188 = pneg %p187
      // Predicated region
      $region29: #{tpu_custom_call.1} parent=5 // pred_check
        _
      $region30: #{tpu_custom_call.1} parent=5 // pred_check_branch
        %190 = sbr.rel (%p187) target = $region32
      $region31: #{tpu_custom_call.1} parent=5 // pred_region
        %s191 = ssub.s32 %s16, 1
        %s192 = sand.u32 %s43, 1
        %s193 = scalar_lea.sflag [#allocation3], %s192
        %s194 = sand.u32 %s43, 1
        %s195 = smul.addr %s194, 256
        %s196 = scalar_lea.vmem [#allocation2], %s195
        // Predicated region
        $region33: #{tpu_custom_call.1} parent=31 // pred_check
          %p197 = pneg %p56
        $region34: #{tpu_custom_call.1} parent=31 // pred_check_branch
          %199 = sbr.rel (%p197) target = $region36
        $region35: #{tpu_custom_call.1} parent=31 // pred_region
          %200 = dma.done %s193, 4096
        $region36: #{tpu_custom_call.1} parent=31 // pred_fallthru
          _
        // Predicated region
        $region37: #{tpu_custom_call.1} parent=31 // pred_check
          %p201 = pneg %p77
        $region38: #{tpu_custom_call.1} parent=31 // pred_check_branch
          %203 = sbr.rel (%p201) target = $region40
        $region39: #{tpu_custom_call.1} parent=31 // pred_region
          %204 = dma.done [#allocation6], 2048
        $region40: #{tpu_custom_call.1} parent=31 // pred_fallthru
          _
        %s205 = sand.u32 %s43, 1
        %s206 = scalar_lea.sflag [#allocation3], %s205
        %s207 = sand.u32 %s43, 1
        %s208 = smul.addr %s207, 256
        %s209 = scalar_lea.vmem [#allocation2], %s208
        %p210 = pneg %p56
        %p211 = pneg %p53
        %p212 = pneg %p77
        %p213 = pneg %p74
        %p214 = pneg %p98
        %p215 = pneg %p95
        %p216 = pneg %p126
        %p217 = pneg %p123
        %s218 = sand.u32 %s113, 1
        %s219 = scalar_lea.sflag [#allocation4], %s218
        %s220 = sand.u32 %s113, 1
        %s221 = smul.addr %s220, 128
        %s222 = scalar_lea.vmem [#allocation7], %s221
        %s223 = smul.u32 32, %s26
        %s224 = smul.u32 32, %s26
        %v226 = vld [vmem:[%s196] sm:$0xff]
        %v227 = vld [vmem:[%s196 + $0x8] sm:$0xff]
        %v228 = vld [vmem:[%s196 + $0x10] sm:$0xff]
        %v229 = vld [vmem:[%s196 + $0x18] sm:$0xff]
        %v230 = vld [vmem:[%s196 + $0x20] sm:$0xff]
        %v231 = vld [vmem:[%s196 + $0x28] sm:$0xff]
        %v232 = vld [vmem:[%s196 + $0x30] sm:$0xff]
        %v233 = vld [vmem:[%s196 + $0x38] sm:$0xff]
        %v234 = vld [vmem:[%s196 + $0x40] sm:$0xff]
        %v235 = vld [vmem:[%s196 + $0x48] sm:$0xff]
        %v236 = vld [vmem:[%s196 + $0x50] sm:$0xff]
        %v237 = vld [vmem:[%s196 + $0x58] sm:$0xff]
        %v238 = vld [vmem:[%s196 + $0x60] sm:$0xff]
        %v239 = vld [vmem:[%s196 + $0x68] sm:$0xff]
        %v240 = vld [vmem:[%s196 + $0x70] sm:$0xff]
        %v241 = vld [vmem:[%s196 + $0x78] sm:$0xff]
        %v242 = vld [vmem:[%s196 + $0x80] sm:$0xff]
        %v243 = vld [vmem:[%s196 + $0x88] sm:$0xff]
        %v244 = vld [vmem:[%s196 + $0x90] sm:$0xff]
        %v245 = vld [vmem:[%s196 + $0x98] sm:$0xff]
        %v246 = vld [vmem:[%s196 + $0xa0] sm:$0xff]
        %v247 = vld [vmem:[%s196 + $0xa8] sm:$0xff]
        %v248 = vld [vmem:[%s196 + $0xb0] sm:$0xff]
        %v249 = vld [vmem:[%s196 + $0xb8] sm:$0xff]
        %v250 = vld [vmem:[%s196 + $0xc0] sm:$0xff]
        %v251 = vld [vmem:[%s196 + $0xc8] sm:$0xff]
        %v252 = vld [vmem:[%s196 + $0xd0] sm:$0xff]
        %v253 = vld [vmem:[%s196 + $0xd8] sm:$0xff]
        %v254 = vld [vmem:[%s196 + $0xe0] sm:$0xff]
        %v255 = vld [vmem:[%s196 + $0xe8] sm:$0xff]
        %v256 = vld [vmem:[%s196 + $0xf0] sm:$0xff]
        %v257 = vld [vmem:[%s196 + $0xf8] sm:$0xff]
        %v258 = vld [vmem:[#allocation5] sm:$0xf]
        %v259 = vld [vmem:[#allocation5 + $0x4] sm:$0xf]
        %v260 = vld [vmem:[#allocation5 + $0x8] sm:$0xf]
        %v261 = vld [vmem:[#allocation5 + $0xc] sm:$0xf]
        %v262 = vld [vmem:[#allocation5 + $0x10] sm:$0xf]
        %v263 = vld [vmem:[#allocation5 + $0x14] sm:$0xf]
        %v264 = vld [vmem:[#allocation5 + $0x18] sm:$0xf]
        %v265 = vld [vmem:[#allocation5 + $0x1c] sm:$0xf]
        %v266 = vld [vmem:[#allocation5 + $0x20] sm:$0xf]
        %v267 = vld [vmem:[#allocation5 + $0x24] sm:$0xf]
        %v268 = vld [vmem:[#allocation5 + $0x28] sm:$0xf]
        %v269 = vld [vmem:[#allocation5 + $0x2c] sm:$0xf]
        %v270 = vld [vmem:[#allocation5 + $0x30] sm:$0xf]
        %v271 = vld [vmem:[#allocation5 + $0x34] sm:$0xf]
        %v272 = vld [vmem:[#allocation5 + $0x38] sm:$0xf]
        %v273 = vld [vmem:[#allocation5 + $0x3c] sm:$0xf]
        %v274 = vld [vmem:[#allocation5 + $0x40] sm:$0xf]
        %v275 = vld [vmem:[#allocation5 + $0x44] sm:$0xf]
        %v276 = vld [vmem:[#allocation5 + $0x48] sm:$0xf]
        %v277 = vld [vmem:[#allocation5 + $0x4c] sm:$0xf]
        %v278 = vld [vmem:[#allocation5 + $0x50] sm:$0xf]
        %v279 = vld [vmem:[#allocation5 + $0x54] sm:$0xf]
        %v280 = vld [vmem:[#allocation5 + $0x58] sm:$0xf]
        %v281 = vld [vmem:[#allocation5 + $0x5c] sm:$0xf]
        %v282 = vld [vmem:[#allocation5 + $0x60] sm:$0xf]
        %v283 = vld [vmem:[#allocation5 + $0x64] sm:$0xf]
        %v284 = vld [vmem:[#allocation5 + $0x68] sm:$0xf]
        %v285 = vld [vmem:[#allocation5 + $0x6c] sm:$0xf]
        %v286 = vld [vmem:[#allocation5 + $0x70] sm:$0xf]
        %v287 = vld [vmem:[#allocation5 + $0x74] sm:$0xf]
        %v288 = vld [vmem:[#allocation5 + $0x78] sm:$0xf]
        %v289 = vld [vmem:[#allocation5 + $0x7c] sm:$0xf]
        %v290 = vld [vmem:[%s2] sm:$0x1]
        %v292 = vlaneseq
        %v293 = vshrl.u32 %v292, 7
        %v294 = vsub.s32 0, %v293
        %v295 = vrot.slane %v290, %v294
        %v329 = vunpack.c.l.b16 %v226
        %v330 = vunpack.c.h.b16 %v226
        %v331 = vunpack.c.l.b16 %v227
        %v332 = vunpack.c.h.b16 %v227
        %v333 = vunpack.c.l.b16 %v228
        %v334 = vunpack.c.h.b16 %v228
        %v335 = vunpack.c.l.b16 %v229
        %v336 = vunpack.c.h.b16 %v229
        %v337 = vunpack.c.l.b16 %v230
        %v338 = vunpack.c.h.b16 %v230
        %v339 = vunpack.c.l.b16 %v231
        %v340 = vunpack.c.h.b16 %v231
        %v341 = vunpack.c.l.b16 %v232
        %v342 = vunpack.c.h.b16 %v232
        %v343 = vunpack.c.l.b16 %v233
        %v344 = vunpack.c.h.b16 %v233
        %v345 = vunpack.c.l.b16 %v234
        %v346 = vunpack.c.h.b16 %v234
        %v347 = vunpack.c.l.b16 %v235
        %v348 = vunpack.c.h.b16 %v235
        %v349 = vunpack.c.l.b16 %v236
        %v350 = vunpack.c.h.b16 %v236
        %v351 = vunpack.c.l.b16 %v237
        %v352 = vunpack.c.h.b16 %v237
        %v353 = vunpack.c.l.b16 %v238
        %v354 = vunpack.c.h.b16 %v238
        %v355 = vunpack.c.l.b16 %v239
        %v356 = vunpack.c.h.b16 %v239
        %v357 = vunpack.c.l.b16 %v240
        %v358 = vunpack.c.h.b16 %v240
        %v359 = vunpack.c.l.b16 %v241
        %v360 = vunpack.c.h.b16 %v241
        %v361 = vunpack.c.l.b16 %v242
        %v362 = vunpack.c.h.b16 %v242
        %v363 = vunpack.c.l.b16 %v243
        %v364 = vunpack.c.h.b16 %v243
        %v365 = vunpack.c.l.b16 %v244
        %v366 = vunpack.c.h.b16 %v244
        %v367 = vunpack.c.l.b16 %v245
        %v368 = vunpack.c.h.b16 %v245
        %v369 = vunpack.c.l.b16 %v246
        %v370 = vunpack.c.h.b16 %v246
        %v371 = vunpack.c.l.b16 %v247
        %v372 = vunpack.c.h.b16 %v247
        %v373 = vunpack.c.l.b16 %v248
        %v374 = vunpack.c.h.b16 %v248
        %v375 = vunpack.c.l.b16 %v249
        %v376 = vunpack.c.h.b16 %v249
        %v377 = vunpack.c.l.b16 %v250
        %v378 = vunpack.c.h.b16 %v250
        %v379 = vunpack.c.l.b16 %v251
        %v380 = vunpack.c.h.b16 %v251
        %v381 = vunpack.c.l.b16 %v252
        %v382 = vunpack.c.h.b16 %v252
        %v383 = vunpack.c.l.b16 %v253
        %v384 = vunpack.c.h.b16 %v253
        %v385 = vunpack.c.l.b16 %v254
        %v386 = vunpack.c.h.b16 %v254
        %v387 = vunpack.c.l.b16 %v255
        %v388 = vunpack.c.h.b16 %v255
        %v389 = vunpack.c.l.b16 %v256
        %v390 = vunpack.c.h.b16 %v256
        %v391 = vunpack.c.l.b16 %v257
        %v392 = vunpack.c.h.b16 %v257
        %v393 = vpack.c.b16 %v331, %v329
        %v394 = vpack.c.b16 %v332, %v330
        %v395 = vpack.c.b16 %v335, %v333
        %v396 = vpack.c.b16 %v336, %v334
        %v397 = vpack.c.b16 %v339, %v337
        %v398 = vpack.c.b16 %v340, %v338
        %v399 = vpack.c.b16 %v343, %v341
        %v400 = vpack.c.b16 %v344, %v342
        %v401 = vpack.c.b16 %v347, %v345
        %v402 = vpack.c.b16 %v348, %v346
        %v403 = vpack.c.b16 %v351, %v349
        %v404 = vpack.c.b16 %v352, %v350
        %v405 = vpack.c.b16 %v355, %v353
        %v406 = vpack.c.b16 %v356, %v354
        %v407 = vpack.c.b16 %v359, %v357
        %v408 = vpack.c.b16 %v360, %v358
        %v409 = vpack.c.b16 %v363, %v361
        %v410 = vpack.c.b16 %v364, %v362
        %v411 = vpack.c.b16 %v367, %v365
        %v412 = vpack.c.b16 %v368, %v366
        %v413 = vpack.c.b16 %v371, %v369
        %v414 = vpack.c.b16 %v372, %v370
        %v415 = vpack.c.b16 %v375, %v373
        %v416 = vpack.c.b16 %v376, %v374
        %v417 = vpack.c.b16 %v379, %v377
        %v418 = vpack.c.b16 %v380, %v378
        %v419 = vpack.c.b16 %v383, %v381
        %v420 = vpack.c.b16 %v384, %v382
        %v421 = vpack.c.b16 %v387, %v385
        %v422 = vpack.c.b16 %v388, %v386
        %v423 = vpack.c.b16 %v391, %v389
        %v424 = vpack.c.b16 %v392, %v390
        %v489 = vunpack.c.l.b16 %v258
        %v490 = vunpack.c.l.b16 %v259
        %v491 = vunpack.c.l.b16 %v260
        %v492 = vunpack.c.l.b16 %v261
        %v493 = vunpack.c.l.b16 %v262
        %v494 = vunpack.c.l.b16 %v263
        %v495 = vunpack.c.l.b16 %v264
        %v496 = vunpack.c.l.b16 %v265
        %v497 = vunpack.c.l.b16 %v266
        %v498 = vunpack.c.l.b16 %v267
        %v499 = vunpack.c.l.b16 %v268
        %v500 = vunpack.c.l.b16 %v269
        %v501 = vunpack.c.l.b16 %v270
        %v502 = vunpack.c.l.b16 %v271
        %v503 = vunpack.c.l.b16 %v272
        %v504 = vunpack.c.l.b16 %v273
        %v505 = vunpack.c.l.b16 %v274
        %v506 = vunpack.c.l.b16 %v275
        %v507 = vunpack.c.l.b16 %v276
        %v508 = vunpack.c.l.b16 %v277
        %v509 = vunpack.c.l.b16 %v278
        %v510 = vunpack.c.l.b16 %v279
        %v511 = vunpack.c.l.b16 %v280
        %v512 = vunpack.c.l.b16 %v281
        %v513 = vunpack.c.l.b16 %v282
        %v514 = vunpack.c.l.b16 %v283
        %v515 = vunpack.c.l.b16 %v284
        %v516 = vunpack.c.l.b16 %v285
        %v517 = vunpack.c.l.b16 %v286
        %v518 = vunpack.c.l.b16 %v287
        %v519 = vunpack.c.l.b16 %v288
        %v520 = vunpack.c.l.b16 %v289
        %v521 = vpack.c.b16 %v490, %v489
        %v522 = vpack.c.b16 %v492, %v491
        %v523 = vpack.c.b16 %v494, %v493
        %v524 = vpack.c.b16 %v496, %v495
        %v525 = vpack.c.b16 %v498, %v497
        %v526 = vpack.c.b16 %v500, %v499
        %v527 = vpack.c.b16 %v502, %v501
        %v528 = vpack.c.b16 %v504, %v503
        %v529 = vpack.c.b16 %v506, %v505
        %v530 = vpack.c.b16 %v508, %v507
        %v531 = vpack.c.b16 %v510, %v509
        %v532 = vpack.c.b16 %v512, %v511
        %v533 = vpack.c.b16 %v514, %v513
        %v534 = vpack.c.b16 %v516, %v515
        %v535 = vpack.c.b16 %v518, %v517
        %v536 = vpack.c.b16 %v520, %v519
        %553 = vmatprep.subr.bf16.mxu0 0
        %554 = vmatpush1.bf16.msra.mxu0 %v528
        %555 = vmatprep.subr.bf16.mxu0 0
        %556 = vmatpush1.bf16.msra.mxu0 %v527
        %557 = vmatprep.subr.bf16.mxu0 0
        %558 = vmatpush1.bf16.msra.mxu0 %v526
        %559 = vmatprep.subr.bf16.mxu0 0
        %560 = vmatpush1.bf16.msra.mxu0 %v525
        %561 = vmatprep.subr.bf16.mxu0 0
        %562 = vmatpush1.bf16.msra.mxu0 %v524
        %563 = vmatprep.subr.bf16.mxu0 0
        %564 = vmatpush1.bf16.msra.mxu0 %v523
        %565 = vmatprep.subr.bf16.mxu0 0
        %566 = vmatpush1.bf16.msra.mxu0 %v522
        %567 = vmatprep.subr.bf16.mxu0 0
        %568 = vmatpush1.bf16.msra.mxu0 %v521
        %569 = vmatprep.subr.bf16.mxu0 0
        %570 = vmatpush2.bf16.msra.mxu0 %v536
        %571 = vmatprep.subr.bf16.mxu0 0
        %572 = vmatpush2.bf16.msra.mxu0 %v535
        %573 = vmatprep.subr.bf16.mxu0 0
        %574 = vmatpush2.bf16.msra.mxu0 %v534
        %575 = vmatprep.subr.bf16.mxu0 0
        %576 = vmatpush2.bf16.msra.mxu0 %v533
        %577 = vmatprep.subr.bf16.mxu0 0
        %578 = vmatpush2.bf16.msra.mxu0 %v532
        %579 = vmatprep.subr.bf16.mxu0 0
        %580 = vmatpush2.bf16.msra.mxu0 %v531
        %581 = vmatprep.subr.bf16.mxu0 0
        %582 = vmatpush2.bf16.msra.mxu0 %v530
        %583 = vmatprep.subr.bf16.mxu0 0
        %584 = vmatpush2.bf16.msra.mxu0 %v529
        %585 = vmatprep.mubr.bf16.mxu0 %v394
        %586 = vmatmul.mubr.bf16.gmra.mxu0 %v393
        %v587 = vpop.f32.mrf.mxu0
        %v588 = vadd.f32 %v295, %v587
        %v589 = vpop.f32.mrf.mxu0
        %v590 = vpop.f32.mrf.mxu0
        %v591 = vadd.f32 %v295, %v590
        %v592 = vpop.f32.mrf.mxu0
        %593 = vmatprep.mubr.bf16.mxu0 %v396
        %594 = vmatmul.mubr.bf16.gmra.mxu0 %v395
        %v595 = vpop.f32.mrf.mxu0
        %v596 = vadd.f32 %v295, %v595
        %v597 = vpop.f32.mrf.mxu0
        %v598 = vpop.f32.mrf.mxu0
        %v599 = vadd.f32 %v295, %v598
        %v600 = vpop.f32.mrf.mxu0
        %601 = vmatprep.mubr.bf16.mxu0 %v398
        %602 = vmatmul.mubr.bf16.gmra.mxu0 %v397
        %v603 = vpop.f32.mrf.mxu0
        %v604 = vadd.f32 %v295, %v603
        %v605 = vpop.f32.mrf.mxu0
        %v606 = vpop.f32.mrf.mxu0
        %v607 = vadd.f32 %v295, %v606
        %v608 = vpop.f32.mrf.mxu0
        %609 = vmatprep.mubr.bf16.mxu0 %v400
        %610 = vmatmul.mubr.bf16.gmra.mxu0 %v399
        %v611 = vpop.f32.mrf.mxu0
        %v612 = vadd.f32 %v295, %v611
        %v613 = vpop.f32.mrf.mxu0
        %v614 = vpop.f32.mrf.mxu0
        %v615 = vadd.f32 %v295, %v614
        %v616 = vpop.f32.mrf.mxu0
        %617 = vmatprep.mubr.bf16.mxu0 %v402
        %618 = vmatmul.mubr.bf16.gmra.mxu0 %v401
        %v619 = vpop.f32.mrf.mxu0
        %v620 = vadd.f32 %v295, %v619
        %v621 = vpop.f32.mrf.mxu0
        %v622 = vpop.f32.mrf.mxu0
        %v623 = vadd.f32 %v295, %v622
        %v624 = vpop.f32.mrf.mxu0
        %625 = vmatprep.mubr.bf16.mxu0 %v404
        %626 = vmatmul.mubr.bf16.gmra.mxu0 %v403
        %v627 = vpop.f32.mrf.mxu0
        %v628 = vadd.f32 %v295, %v627
        %v629 = vpop.f32.mrf.mxu0
        %v630 = vpop.f32.mrf.mxu0
        %v631 = vadd.f32 %v295, %v630
        %v632 = vpop.f32.mrf.mxu0
        %633 = vmatprep.mubr.bf16.mxu0 %v406
        %634 = vmatmul.mubr.bf16.gmra.mxu0 %v405
        %v635 = vpop.f32.mrf.mxu0
        %v636 = vadd.f32 %v295, %v635
        %v637 = vpop.f32.mrf.mxu0
        %v638 = vpop.f32.mrf.mxu0
        %v639 = vadd.f32 %v295, %v638
        %v640 = vpop.f32.mrf.mxu0
        %641 = vmatprep.mubr.bf16.mxu0 %v408
        %642 = vmatmul.mubr.bf16.gmra.mxu0 %v407
        %v643 = vpop.f32.mrf.mxu0
        %v644 = vadd.f32 %v295, %v643
        %v645 = vpop.f32.mrf.mxu0
        %v646 = vpop.f32.mrf.mxu0
        %v647 = vadd.f32 %v295, %v646
        %v648 = vpop.f32.mrf.mxu0
        %649 = vmatprep.mubr.bf16.mxu0 %v410
        %650 = vmatmul.mubr.bf16.gmra.mxu0 %v409
        %v651 = vpop.f32.mrf.mxu0
        %v652 = vadd.f32 %v295, %v651
        %v653 = vpop.f32.mrf.mxu0
        %v654 = vpop.f32.mrf.mxu0
        %v655 = vadd.f32 %v295, %v654
        %v656 = vpop.f32.mrf.mxu0
        %657 = vmatprep.mubr.bf16.mxu0 %v412
        %658 = vmatmul.mubr.bf16.gmra.mxu0 %v411
        %v659 = vpop.f32.mrf.mxu0
        %v660 = vadd.f32 %v295, %v659
        %v661 = vpop.f32.mrf.mxu0
        %v662 = vpop.f32.mrf.mxu0
        %v663 = vadd.f32 %v295, %v662
        %v664 = vpop.f32.mrf.mxu0
        %665 = vmatprep.mubr.bf16.mxu0 %v414
        %666 = vmatmul.mubr.bf16.gmra.mxu0 %v413
        %v667 = vpop.f32.mrf.mxu0
        %v668 = vadd.f32 %v295, %v667
        %v669 = vpop.f32.mrf.mxu0
        %v670 = vpop.f32.mrf.mxu0
        %v671 = vadd.f32 %v295, %v670
        %v672 = vpop.f32.mrf.mxu0
        %673 = vmatprep.mubr.bf16.mxu0 %v416
        %674 = vmatmul.mubr.bf16.gmra.mxu0 %v415
        %v675 = vpop.f32.mrf.mxu0
        %v676 = vadd.f32 %v295, %v675
        %v677 = vpop.f32.mrf.mxu0
        %v678 = vpop.f32.mrf.mxu0
        %v679 = vadd.f32 %v295, %v678
        %v680 = vpop.f32.mrf.mxu0
        %681 = vmatprep.mubr.bf16.mxu0 %v418
        %682 = vmatmul.mubr.bf16.gmra.mxu0 %v417
        %v683 = vpop.f32.mrf.mxu0
        %v684 = vadd.f32 %v295, %v683
        %v685 = vpop.f32.mrf.mxu0
        %v686 = vpop.f32.mrf.mxu0
        %v687 = vadd.f32 %v295, %v686
        %v688 = vpop.f32.mrf.mxu0
        %689 = vmatprep.mubr.bf16.mxu0 %v420
        %690 = vmatmul.mubr.bf16.gmra.mxu0 %v419
        %v691 = vpop.f32.mrf.mxu0
        %v692 = vadd.f32 %v295, %v691
        %v693 = vpop.f32.mrf.mxu0
        %v694 = vpop.f32.mrf.mxu0
        %v695 = vadd.f32 %v295, %v694
        %v696 = vpop.f32.mrf.mxu0
        %697 = vmatprep.mubr.bf16.mxu0 %v422
        %698 = vmatmul.mubr.bf16.gmra.mxu0 %v421
        %v699 = vpop.f32.mrf.mxu0
        %v700 = vadd.f32 %v295, %v699
        %v701 = vpop.f32.mrf.mxu0
        %v702 = vpop.f32.mrf.mxu0
        %v703 = vadd.f32 %v295, %v702
        %v704 = vpop.f32.mrf.mxu0
        %705 = vmatprep.mubr.bf16.mxu0 %v424
        %706 = vmatmul.mubr.bf16.gmra.mxu0 %v423
        %v707 = vpop.f32.mrf.mxu0
        %v708 = vadd.f32 %v295, %v707
        %v709 = vpop.f32.mrf.mxu0
        %v710 = vpop.f32.mrf.mxu0
        %v711 = vadd.f32 %v295, %v710
        %v712 = vpop.f32.mrf.mxu0
        %713 = vdwg.mxu0
        %v714 = vmax.f32 %v588, 0.0
        %v715 = vmax.f32 %v591, 0.0
        %v716 = vmax.f32 %v596, 0.0
        %v717 = vmax.f32 %v599, 0.0
        %v718 = vmax.f32 %v604, 0.0
        %v719 = vmax.f32 %v607, 0.0
        %v720 = vmax.f32 %v612, 0.0
        %v721 = vmax.f32 %v615, 0.0
        %v722 = vmax.f32 %v620, 0.0
        %v723 = vmax.f32 %v623, 0.0
        %v724 = vmax.f32 %v628, 0.0
        %v725 = vmax.f32 %v631, 0.0
        %v726 = vmax.f32 %v636, 0.0
        %v727 = vmax.f32 %v639, 0.0
        %v728 = vmax.f32 %v644, 0.0
        %v729 = vmax.f32 %v647, 0.0
        %v730 = vmax.f32 %v652, 0.0
        %v731 = vmax.f32 %v655, 0.0
        %v732 = vmax.f32 %v660, 0.0
        %v733 = vmax.f32 %v663, 0.0
        %v734 = vmax.f32 %v668, 0.0
        %v735 = vmax.f32 %v671, 0.0
        %v736 = vmax.f32 %v676, 0.0
        %v737 = vmax.f32 %v679, 0.0
        %v738 = vmax.f32 %v684, 0.0
        %v739 = vmax.f32 %v687, 0.0
        %v740 = vmax.f32 %v692, 0.0
        %v741 = vmax.f32 %v695, 0.0
        %v742 = vmax.f32 %v700, 0.0
        %v743 = vmax.f32 %v703, 0.0
        %v744 = vmax.f32 %v708, 0.0
        %v745 = vmax.f32 %v711, 0.0
        %v746 = vpack.c.bf16 %v715, %v714
        %v747 = vpack.c.bf16 %v717, %v716
        %v748 = vpack.c.bf16 %v719, %v718
        %v749 = vpack.c.bf16 %v721, %v720
        %v750 = vpack.c.bf16 %v723, %v722
        %v751 = vpack.c.bf16 %v725, %v724
        %v752 = vpack.c.bf16 %v727, %v726
        %v753 = vpack.c.bf16 %v729, %v728
        %v754 = vpack.c.bf16 %v731, %v730
        %v755 = vpack.c.bf16 %v733, %v732
        %v756 = vpack.c.bf16 %v735, %v734
        %v757 = vpack.c.bf16 %v737, %v736
        %v758 = vpack.c.bf16 %v739, %v738
        %v759 = vpack.c.bf16 %v741, %v740
        %v760 = vpack.c.bf16 %v743, %v742
        %v761 = vpack.c.bf16 %v745, %v744
        %v778 = vunpack.c.l.b16 %v746
        %v779 = vunpack.c.h.b16 %v746
        %v780 = vunpack.c.l.b16 %v747
        %v781 = vunpack.c.h.b16 %v747
        %v782 = vunpack.c.l.b16 %v748
        %v783 = vunpack.c.h.b16 %v748
        %v784 = vunpack.c.l.b16 %v749
        %v785 = vunpack.c.h.b16 %v749
        %v786 = vunpack.c.l.b16 %v750
        %v787 = vunpack.c.h.b16 %v750
        %v788 = vunpack.c.l.b16 %v751
        %v789 = vunpack.c.h.b16 %v751
        %v790 = vunpack.c.l.b16 %v752
        %v791 = vunpack.c.h.b16 %v752
        %v792 = vunpack.c.l.b16 %v753
        %v793 = vunpack.c.h.b16 %v753
        %v794 = vunpack.c.l.b16 %v754
        %v795 = vunpack.c.h.b16 %v754
        %v796 = vunpack.c.l.b16 %v755
        %v797 = vunpack.c.h.b16 %v755
        %v798 = vunpack.c.l.b16 %v756
        %v799 = vunpack.c.h.b16 %v756
        %v800 = vunpack.c.l.b16 %v757
        %v801 = vunpack.c.h.b16 %v757
        %v802 = vunpack.c.l.b16 %v758
        %v803 = vunpack.c.h.b16 %v758
        %v804 = vunpack.c.l.b16 %v759
        %v805 = vunpack.c.h.b16 %v759
        %v806 = vunpack.c.l.b16 %v760
        %v807 = vunpack.c.h.b16 %v760
        %v808 = vunpack.c.l.b16 %v761
        %v809 = vunpack.c.h.b16 %v761
        %v810 = vpack.c.b16 %v778, %v778
        %v811 = vpack.c.b16 %v779, %v779
        %v812 = vpack.c.b16 %v780, %v780
        %v813 = vpack.c.b16 %v781, %v781
        %v814 = vpack.c.b16 %v782, %v782
        %v815 = vpack.c.b16 %v783, %v783
        %v816 = vpack.c.b16 %v784, %v784
        %v817 = vpack.c.b16 %v785, %v785
        %v818 = vpack.c.b16 %v786, %v786
        %v819 = vpack.c.b16 %v787, %v787
        %v820 = vpack.c.b16 %v788, %v788
        %v821 = vpack.c.b16 %v789, %v789
        %v822 = vpack.c.b16 %v790, %v790
        %v823 = vpack.c.b16 %v791, %v791
        %v824 = vpack.c.b16 %v792, %v792
        %v825 = vpack.c.b16 %v793, %v793
        %v826 = vpack.c.b16 %v794, %v794
        %v827 = vpack.c.b16 %v795, %v795
        %v828 = vpack.c.b16 %v796, %v796
        %v829 = vpack.c.b16 %v797, %v797
        %v830 = vpack.c.b16 %v798, %v798
        %v831 = vpack.c.b16 %v799, %v799
        %v832 = vpack.c.b16 %v800, %v800
        %v833 = vpack.c.b16 %v801, %v801
        %v834 = vpack.c.b16 %v802, %v802
        %v835 = vpack.c.b16 %v803, %v803
        %v836 = vpack.c.b16 %v804, %v804
        %v837 = vpack.c.b16 %v805, %v805
        %v838 = vpack.c.b16 %v806, %v806
        %v839 = vpack.c.b16 %v807, %v807
        %v840 = vpack.c.b16 %v808, %v808
        %v841 = vpack.c.b16 %v809, %v809
        %874 = vst [vmem:[%s222] sm:$0xf] %v810
        %875 = vst [vmem:[%s222 + $0x4] sm:$0xf] %v811
        %876 = vst [vmem:[%s222 + $0x8] sm:$0xf] %v812
        %877 = vst [vmem:[%s222 + $0xc] sm:$0xf] %v813
        %878 = vst [vmem:[%s222 + $0x10] sm:$0xf] %v814
        %879 = vst [vmem:[%s222 + $0x14] sm:$0xf] %v815
        %880 = vst [vmem:[%s222 + $0x18] sm:$0xf] %v816
        %881 = vst [vmem:[%s222 + $0x1c] sm:$0xf] %v817
        %882 = vst [vmem:[%s222 + $0x20] sm:$0xf] %v818
        %883 = vst [vmem:[%s222 + $0x24] sm:$0xf] %v819
        %884 = vst [vmem:[%s222 + $0x28] sm:$0xf] %v820
        %885 = vst [vmem:[%s222 + $0x2c] sm:$0xf] %v821
        %886 = vst [vmem:[%s222 + $0x30] sm:$0xf] %v822
        %887 = vst [vmem:[%s222 + $0x34] sm:$0xf] %v823
        %888 = vst [vmem:[%s222 + $0x38] sm:$0xf] %v824
        %889 = vst [vmem:[%s222 + $0x3c] sm:$0xf] %v825
        %890 = vst [vmem:[%s222 + $0x40] sm:$0xf] %v826
        %891 = vst [vmem:[%s222 + $0x44] sm:$0xf] %v827
        %892 = vst [vmem:[%s222 + $0x48] sm:$0xf] %v828
        %893 = vst [vmem:[%s222 + $0x4c] sm:$0xf] %v829
        %894 = vst [vmem:[%s222 + $0x50] sm:$0xf] %v830
        %895 = vst [vmem:[%s222 + $0x54] sm:$0xf] %v831
        %896 = vst [vmem:[%s222 + $0x58] sm:$0xf] %v832
        %897 = vst [vmem:[%s222 + $0x5c] sm:$0xf] %v833
        %898 = vst [vmem:[%s222 + $0x60] sm:$0xf] %v834
        %899 = vst [vmem:[%s222 + $0x64] sm:$0xf] %v835
        %900 = vst [vmem:[%s222 + $0x68] sm:$0xf] %v836
        %901 = vst [vmem:[%s222 + $0x6c] sm:$0xf] %v837
        %902 = vst [vmem:[%s222 + $0x70] sm:$0xf] %v838
        %903 = vst [vmem:[%s222 + $0x74] sm:$0xf] %v839
        %904 = vst [vmem:[%s222 + $0x78] sm:$0xf] %v840
        %905 = vst [vmem:[%s222 + $0x7c] sm:$0xf] %v841
        %s906 = sand.u32 %s113, 1
        %s907 = scalar_lea.sflag [#allocation4], %s906
        %s908 = sand.u32 %s113, 1
        %s909 = smul.addr %s908, 128
        %s910 = scalar_lea.vmem [#allocation7], %s909
        // Predicated region
        $region41: #{tpu_custom_call.1} parent=31 // pred_check
          %p911 = pneg %p123
        $region42: #{tpu_custom_call.1} parent=31 // pred_check_branch
          %913 = sbr.rel (%p911) target = $region44
        $region43: #{tpu_custom_call.1} parent=31 // pred_region
          %s914 = smul.u32 32, %s26
          %s916 = ssub.s32 2048, 2048
          %917 = vsyncadd %s907, %s916
          %s918 = smul.addr %s25, 32
          %s919 = sadd.s32 %s914, %s918
          %s920 = smul.addr %s919, 64
          %s921 = scalar_lea.hbm %s3, %s920
          %s922 = sshll.u32 %s910, 4
          %s923 = int_to_ptr.vmem [resolvable:$true] %s922
          %928 = dma.vmem_to_hbm [thread:$0]  %s923, 2048, %s921, %s907, 64, 64, 4
        $region44: #{tpu_custom_call.1} parent=31 // pred_fallthru
          _
      $region32: #{tpu_custom_call.1} parent=5 // pred_fallthru
        _
      %p929 = scmp.le.s32.totalorder 2, %s16
      // Predicated region
      $region45: #{tpu_custom_call.1} parent=5 // pred_check
        %p930 = pneg %p929
      $region46: #{tpu_custom_call.1} parent=5 // pred_check_branch
        %932 = sbr.rel (%p930) target = $region48
      $region47: #{tpu_custom_call.1} parent=5 // pred_region
        %s933 = ssub.s32 %s16, 2
        // Predicated region
        $region49: #{tpu_custom_call.1} parent=47 // pred_check
          %p934 = pneg %p129
        $region50: #{tpu_custom_call.1} parent=47 // pred_check_branch
          %936 = sbr.rel (%p934) target = $region52
        $region51: #{tpu_custom_call.1} parent=47 // pred_region
          %s937 = sand.u32 %s114, 1
          %s938 = scalar_lea.sflag [#allocation4], %s937
          %s939 = sand.u32 %s114, 1
          %s940 = smul.addr %s939, 128
          %s941 = scalar_lea.vmem [#allocation7], %s940
          %942 = dma.done %s938, 2048
        $region52: #{tpu_custom_call.1} parent=47 // pred_fallthru
          _
      $region48: #{tpu_custom_call.1} parent=5 // pred_fallthru
        _
    $region6: #{tpu_custom_call.1} parent=1 // loop_footer
      %s20 = sadd.s32 1, %s16
    $region7: #{tpu_custom_call.1} parent=1 // loop_footer_branch
      %15 = sbr.rel target = $region3
    $region8: #{tpu_custom_call.1} parent=1 // loop_exit
      _
    %943 = vsyncpa [#allocation3], 1
    %s944 = scalar_lea.sflag [#allocation3], 1
    %945 = vsyncpa %s944, 1
    %946 = vsyncpa [#allocation6], 1
    %947 = vsyncpa [#allocation4], 1
    %s948 = scalar_lea.sflag [#allocation4], 1
    %949 = vsyncpa %s948, 1

</llo_original>
